<compile_context>
chip_gen: v5e
topology: v5e:2x2
jax: 0.10.0
libtpu: 0.0.40
codegen_flags: <defaults>
</compile_context>

<pallas_src>
import jax
import jax.numpy as jnp
from jax.experimental import pallas as pl
from jax.experimental.pallas import tpu as pltpu

BN_EPS = 1e-5


# ---------------------------------------------------------------------------
# Pallas kernel: fused attention gate over one (image, pixel-tile) block
# ---------------------------------------------------------------------------
def _attention_block_kernel(g_ref, x_ref, wgT_ref, wxT_ref, gsh_ref, xsh_ref,
                            wpsi_ref, psish_ref, out_ref):
    """Per grid step (channels = sublanes, pixels = lanes):
      g_ref:    (1, F_g, TP)   bf16  gating features
      x_ref:    (1, F_l, TP)   bf16  skip features
      wgT_ref:  (F_int, F_g)   bf16  W_g^T with BN scale folded in
      wxT_ref:  (F_int, F_l)   bf16  W_x^T with BN scale folded in
      gsh_ref:  (F_int, 1)     f32   folded bias+BN shift for W_g path
      xsh_ref:  (F_int, 1)     f32   folded bias+BN shift for W_x path
      wpsi_ref: (F_int, 1)     f32   psi conv weight with BN scale folded in
      psish_ref:(1, 1)         f32   folded psi bias+BN shift
      out_ref:  (1, F_l, TP)
    """
    gb = g_ref[0]                              # (F_g, TP)
    xb = x_ref[0]                              # (F_l, TP)
    gb16 = gb if gb.dtype == jnp.bfloat16 else gb.astype(jnp.bfloat16)
    xb16 = xb if xb.dtype == jnp.bfloat16 else xb.astype(jnp.bfloat16)

    # g1 = BN(Conv1x1(g)), x1 = BN(Conv1x1(x))  -- bf16 MXU matmuls, f32 accumulate
    g1 = jnp.dot(wgT_ref[...], gb16,
                 preferred_element_type=jnp.float32) + gsh_ref[...]   # (F_int, TP)
    x1 = jnp.dot(wxT_ref[...], xb16,
                 preferred_element_type=jnp.float32) + xsh_ref[...]   # (F_int, TP)

    # ReLU in f32 (v5e has no bf16 VPU)
    p = jnp.maximum(g1 + x1, 0.0)                                      # (F_int, TP)

    # psi = Sigmoid(BN(Conv1x1(p))) with a single output channel:
    # Cout=1 -> VPU multiply + sublane (XLU) reduce instead of a 1-row MXU matmul.
    s = jnp.sum(p * wpsi_ref[...], axis=0, keepdims=True) + psish_ref[...]  # (1, TP)
    s = jax.nn.sigmoid(s)

    # out = x * psi  (gating mul in f32, stored in the output dtype)
    out_ref[0] = (xb.astype(jnp.float32) * s).astype(out_ref.dtype)


# ---------------------------------------------------------------------------
# Tile selection: big, lane-aligned, divides H*W, keeps >= 2 grid steps
# ---------------------------------------------------------------------------
def _choose_pixel_tile(HW, N, max_tile=2048):
    if HW % 128 != 0:
        return HW                       # full-extent block (no padding needed)
    tp = min(max_tile, HW)
    tp -= tp % 128
    # If there is only one image, keep >= 2 pixel tiles so v7x's 2 TCs stay busy.
    if N == 1 and HW // tp < 2 and tp > 128:
        tp = max(128, (HW // 2) - ((HW // 2) % 128))
    # Prefer an exact divisor of HW -> no ragged tail, no masked stores.
    while HW % tp != 0:
        tp -= 128
    return tp


# ---------------------------------------------------------------------------
# Wrapper (NCHW in, NCHW out; no transposes, no pads)
# ---------------------------------------------------------------------------
def attention_block_apply(g_nchw, x_nchw, folded, *, max_pixel_tile=2048):
    """g_nchw: (N, F_g, H, W); x_nchw: (N, F_l, H, W)  -> (N, F_l, H, W)."""
    N, Fg, H, W = g_nchw.shape
    Fl = x_nchw.shape[1]
    Fint = folded['wgT'].shape[0]
    HW = H * W

    # Free (contiguous) reshapes: channels stay on sublanes, pixels become lanes.
    g3 = g_nchw.reshape(N, Fg, HW)
    x3 = x_nchw.reshape(N, Fl, HW)

    tp = _choose_pixel_tile(HW, N, max_pixel_tile)
    num_tiles = HW // tp

    wgT = folded['wgT'].astype(jnp.bfloat16)
    wxT = folded['wxT'].astype(jnp.bfloat16)
    out_dtype = x_nchw.dtype

    out = pl.pallas_call(
        _attention_block_kernel,
        out_shape=jax.ShapeDtypeStruct((N, Fl, HW), out_dtype),
        grid=(N, num_tiles),
        in_specs=[
            pl.BlockSpec((1, Fg, tp), lambda n, j: (n, 0, j)),   # g tile
            pl.BlockSpec((1, Fl, tp), lambda n, j: (n, 0, j)),   # x tile
            pl.BlockSpec((Fint, Fg), lambda n, j: (0, 0)),       # W_g^T (folded)
            pl.BlockSpec((Fint, Fl), lambda n, j: (0, 0)),       # W_x^T (folded)
            pl.BlockSpec((Fint, 1), lambda n, j: (0, 0)),        # g shift
            pl.BlockSpec((Fint, 1), lambda n, j: (0, 0)),        # x shift
            pl.BlockSpec((Fint, 1), lambda n, j: (0, 0)),        # psi weight (folded)
            pl.BlockSpec((1, 1), lambda n, j: (0, 0)),           # psi shift
        ],
        out_specs=pl.BlockSpec((1, Fl, tp), lambda n, j: (n, 0, j)),
        compiler_params=pltpu.CompilerParams(
            dimension_semantics=("parallel", "parallel"),
            vmem_limit_bytes=32 * 1024 * 1024),
    )(g3, x3, wgT, wxT,
      folded['g_shift'], folded['x_shift'],
      folded['wpsi_col'], folded['psi_shift'])

    return out.reshape(N, Fl, H, W)


@jax.jit
def attention_block_jit(g, x, folded):
    return attention_block_apply(g, x, folded)


# ---------------------------------------------------------------------------
# Parameter construction + eval-mode BN folding
# ---------------------------------------------------------------------------
def init_raw_params(key, F_g, F_l, F_int):
    ks = jax.random.split(key, 20)
    u = jax.random.uniform
    n = jax.random.normal
    return dict(
        # conv weights stored as (Cin, Cout) since kernels are 1x1
        wg=n(ks[0], (F_g, F_int), jnp.float32) / jnp.sqrt(float(F_g)),
        bg=0.02 * n(ks[1], (F_int,), jnp.float32),
        wx=n(ks[2], (F_l, F_int), jnp.float32) / jnp.sqrt(float(F_l)),
        bx=0.02 * n(ks[3], (F_int,), jnp.float32),
        wpsi=n(ks[4], (F_int,), jnp.float32) / jnp.sqrt(float(F_int)),
        bpsi=0.02 * n(ks[5], (), jnp.float32),
        # eval-mode BN parameters / running stats
        g_gamma=1.0 + 0.1 * n(ks[6], (F_int,), jnp.float32),
        g_beta=0.1 * n(ks[7], (F_int,), jnp.float32),
        g_mean=0.1 * n(ks[8], (F_int,), jnp.float32),
        g_var=0.5 + u(ks[9], (F_int,), jnp.float32),
        x_gamma=1.0 + 0.1 * n(ks[10], (F_int,), jnp.float32),
        x_beta=0.1 * n(ks[11], (F_int,), jnp.float32),
        x_mean=0.1 * n(ks[12], (F_int,), jnp.float32),
        x_var=0.5 + u(ks[13], (F_int,), jnp.float32),
        p_gamma=1.0 + 0.1 * n(ks[14], (), jnp.float32),
        p_beta=0.1 * n(ks[15], (), jnp.float32),
        p_mean=0.1 * n(ks[16], (), jnp.float32),
        p_var=0.5 + u(ks[17], (), jnp.float32),
    )


def fold_params(raw):
    """Fold conv bias + eval-mode BN into (W^T * scale, shift), NCHW-native shapes."""
    F_int = raw['wg'].shape[1]
    g_scale = raw['g_gamma'] / jnp.sqrt(raw['g_var'] + BN_EPS)
    x_scale = raw['x_gamma'] / jnp.sqrt(raw['x_var'] + BN_EPS)
    p_scale = raw['p_gamma'] / jnp.sqrt(raw['p_var'] + BN_EPS)
    return dict(
        wgT=(raw['wg'].T * g_scale[:, None]),                              # (F_int, F_g)
        g_shift=(raw['g_beta'] + (raw['bg'] - raw['g_mean']) * g_scale
                 ).reshape(F_int, 1),
        wxT=(raw['wx'].T * x_scale[:, None]),                              # (F_int, F_l)
        x_shift=(raw['x_beta'] + (raw['bx'] - raw['x_mean']) * x_scale
                 ).reshape(F_int, 1),
        wpsi_col=(raw['wpsi'] * p_scale).reshape(F_int, 1),
        psi_shift=jnp.reshape(
            raw['p_beta'] + (raw['bpsi'] - raw['p_mean']) * p_scale, (1, 1)),
    )


# ---------------------------------------------------------------------------
# Pure-JAX reference (direct translation of the PyTorch eval-mode forward)
# ---------------------------------------------------------------------------
def reference_forward(g, x, raw):
    def conv1x1(inp, w, b):
        return jnp.einsum('nchw,cf->nfhw', inp, w) + b[None, :, None, None]

    def bn(inp, gamma, beta, mean, var):
        gamma, beta, mean, var = (jnp.reshape(t, (1, -1, 1, 1))
                                  for t in (gamma, beta, mean, var))
        return gamma * (inp - mean) / jnp.sqrt(var + BN_EPS) + beta

    g1 = bn(conv1x1(g, raw['wg'], raw['bg']),
            raw['g_gamma'], raw['g_beta'], raw['g_mean'], raw['g_var'])
    x1 = bn(conv1x1(x, raw['wx'], raw['bx']),
            raw['x_gamma'], raw['x_beta'], raw['x_mean'], raw['x_var'])
    p = jnp.maximum(g1 + x1, 0.0)
    psi = jnp.einsum('nfhw,f->nhw', p, raw['wpsi'])[:, None] + raw['bpsi']
    psi = bn(psi, raw['p_gamma'][None], raw['p_beta'][None],
             raw['p_mean'][None], raw['p_var'][None])
    psi = jax.nn.sigmoid(psi)
    return x * psi


# ---------------------------------------------------------------------------
if __name__ == "__main__":
    # Small but MXU/lane-friendly shapes: F_g = F_l = 128, F_int = 64, 16x16 spatial.
    N, F_g, F_l, F_int, H, W = 2, 128, 128, 64, 16, 16

    key = jax.random.PRNGKey(0)
    kg, kx, kp = jax.random.split(key, 3)
    g32 = jax.random.normal(kg, (N, F_g, H, W), jnp.float32)   # NCHW like torch
    x32 = jax.random.normal(kx, (N, F_l, H, W), jnp.float32)

    raw = init_raw_params(kp, F_g, F_l, F_int)
    folded = fold_params(raw)

    # Caller-provided bf16 activations (halves kernel HBM traffic); bf16 output.
    g_bf = g32.astype(jnp.bfloat16)
    x_bf = x32.astype(jnp.bfloat16)

    out = attention_block_jit(g_bf, x_bf, folded)
    out = jax.block_until_ready(out)

    assert out.shape == (N, F_l, H, W), out.shape
    assert out.dtype == jnp.bfloat16, out.dtype
    out32 = out.astype(jnp.float32)
    assert bool(jnp.all(jnp.isfinite(out32)))

    ref = reference_forward(g32, x32, raw)
    rel_err = float(jnp.max(jnp.abs(out32 - ref)) / (jnp.max(jnp.abs(ref)) + 1e-6))
    assert rel_err < 0.1, f"relative error too large: {rel_err}"

    print("KERNEL_OK")
</pallas_src>

<mosaic_0001>
module attributes {stable_mosaic.version = 11 : i64} {
  func.func @_attention_block_kernel(%arg0: i32, %arg1: i32, %arg2: memref<1x128x256xbf16, #tpu.memory_space<vmem>>, %arg3: memref<1x128x256xbf16, #tpu.memory_space<vmem>>, %arg4: memref<64x128xbf16, #tpu.memory_space<vmem>>, %arg5: memref<64x128xbf16, #tpu.memory_space<vmem>>, %arg6: memref<64x1xf32, #tpu.memory_space<vmem>>, %arg7: memref<64x1xf32, #tpu.memory_space<vmem>>, %arg8: memref<64x1xf32, #tpu.memory_space<vmem>>, %arg9: memref<1x1xf32, #tpu.memory_space<vmem>>, %arg10: memref<1x128x256xbf16, #tpu.memory_space<vmem>>) attributes {dimension_semantics = [#tpu.dimension_semantics<parallel>, #tpu.dimension_semantics<parallel>], iteration_bounds = array<i64: 2, 1>, scalar_prefetch = 0 : i64, scratch_operands = 0 : i64, tpu.core_type = #tpu.core_type<tc>, window_params = [{transform_indices = @transform_0, window_bounds = array<i64: 1, 128, 256>}, {transform_indices = @transform_1, window_bounds = array<i64: 1, 128, 256>}, {pipeline_mode = #tpu.pipeline_mode<synchronous>, transform_indices = @transform_2, window_bounds = array<i64: 64, 128>}, {pipeline_mode = #tpu.pipeline_mode<synchronous>, transform_indices = @transform_3, window_bounds = array<i64: 64, 128>}, {pipeline_mode = #tpu.pipeline_mode<synchronous>, transform_indices = @transform_4, window_bounds = array<i64: 64, 1>}, {pipeline_mode = #tpu.pipeline_mode<synchronous>, transform_indices = @transform_5, window_bounds = array<i64: 64, 1>}, {pipeline_mode = #tpu.pipeline_mode<synchronous>, transform_indices = @transform_6, window_bounds = array<i64: 64, 1>}, {pipeline_mode = #tpu.pipeline_mode<synchronous>, transform_indices = @transform_7, window_bounds = array<i64: 1, 1>}, {transform_indices = @transform_8, window_bounds = array<i64: 1, 128, 256>}]} {
    %c0 = arith.constant 0 : index
    %c0_0 = arith.constant 0 : index
    %c0_1 = arith.constant 0 : index
    %0 = vector.load %arg2[%c0, %c0_0, %c0_1] : memref<1x128x256xbf16, #tpu.memory_space<vmem>>, vector<1x128x256xbf16>
    %1 = vector.shape_cast %0 : vector<1x128x256xbf16> to vector<128x256xbf16>
    %c0_2 = arith.constant 0 : index
    %c0_3 = arith.constant 0 : index
    %c0_4 = arith.constant 0 : index
    %2 = vector.load %arg3[%c0_2, %c0_3, %c0_4] : memref<1x128x256xbf16, #tpu.memory_space<vmem>>, vector<1x128x256xbf16>
    %3 = vector.shape_cast %2 : vector<1x128x256xbf16> to vector<128x256xbf16>
    %c0_5 = arith.constant 0 : index
    %c0_6 = arith.constant 0 : index
    %4 = vector.load %arg4[%c0_5, %c0_6] : memref<64x128xbf16, #tpu.memory_space<vmem>>, vector<64x128xbf16>
    %cst = arith.constant dense<0.000000e+00> : vector<64x256xf32>
    %5 = tpu.matmul %4, %1, %cst {dimension_numbers = #tpu.dot_dimension_numbers<[1], [0], [0], [1], [0, 0, 1, 1], [], []>} : vector<64x128xbf16>, vector<128x256xbf16>, vector<64x256xf32> -> vector<64x256xf32>
    %c0_7 = arith.constant 0 : index
    %c0_8 = arith.constant 0 : index
    %6 = vector.load %arg6[%c0_7, %c0_8] : memref<64x1xf32, #tpu.memory_space<vmem>>, vector<64x1xf32>
    %7 = vector.broadcast %6 : vector<64x1xf32> to vector<64x256xf32>
    %8 = arith.addf %5, %7 : vector<64x256xf32>
    %c0_9 = arith.constant 0 : index
    %c0_10 = arith.constant 0 : index
    %9 = vector.load %arg5[%c0_9, %c0_10] : memref<64x128xbf16, #tpu.memory_space<vmem>>, vector<64x128xbf16>
    %cst_11 = arith.constant dense<0.000000e+00> : vector<64x256xf32>
    %10 = tpu.matmul %9, %3, %cst_11 {dimension_numbers = #tpu.dot_dimension_numbers<[1], [0], [0], [1], [0, 0, 1, 1], [], []>} : vector<64x128xbf16>, vector<128x256xbf16>, vector<64x256xf32> -> vector<64x256xf32>
    %c0_12 = arith.constant 0 : index
    %c0_13 = arith.constant 0 : index
    %11 = vector.load %arg7[%c0_12, %c0_13] : memref<64x1xf32, #tpu.memory_space<vmem>>, vector<64x1xf32>
    %12 = vector.broadcast %11 : vector<64x1xf32> to vector<64x256xf32>
    %13 = arith.addf %10, %12 : vector<64x256xf32>
    %14 = arith.addf %8, %13 : vector<64x256xf32>
    %cst_14 = arith.constant 0.000000e+00 : f32
    %15 = vector.broadcast %cst_14 : f32 to vector<64x256xf32>
    %16 = arith.maximumf %14, %15 : vector<64x256xf32>
    %c0_15 = arith.constant 0 : index
    %c0_16 = arith.constant 0 : index
    %17 = vector.load %arg8[%c0_15, %c0_16] : memref<64x1xf32, #tpu.memory_space<vmem>>, vector<64x1xf32>
    %18 = vector.broadcast %17 : vector<64x1xf32> to vector<64x256xf32>
    %19 = arith.mulf %16, %18 : vector<64x256xf32>
    %cst_17 = arith.constant dense<0.000000e+00> : vector<256xf32>
    %20 = vector.multi_reduction <add>, %19, %cst_17 [0] : vector<64x256xf32> to vector<256xf32>
    %21 = vector.shape_cast %20 : vector<256xf32> to vector<1x256xf32>
    %c0_18 = arith.constant 0 : index
    %c0_19 = arith.constant 0 : index
    %22 = vector.load %arg9[%c0_18, %c0_19] : memref<1x1xf32, #tpu.memory_space<vmem>>, vector<1x1xf32>
    %23 = vector.broadcast %22 : vector<1x1xf32> to vector<1x256xf32>
    %24 = arith.addf %21, %23 : vector<1x256xf32>
    %25 = arith.negf %24 : vector<1x256xf32>
    %26 = math.exp %25 : vector<1x256xf32>
    %cst_20 = arith.constant 1.000000e+00 : f32
    %27 = vector.broadcast %cst_20 : f32 to vector<1x256xf32>
    %28 = arith.addf %27, %26 : vector<1x256xf32>
    %29 = arith.divf %27, %28 : vector<1x256xf32>
    %30 = arith.extf %3 : vector<128x256xbf16> to vector<128x256xf32>
    %31 = vector.broadcast %29 : vector<1x256xf32> to vector<128x256xf32>
    %32 = arith.mulf %30, %31 : vector<128x256xf32>
    %33 = arith.truncf %32 : vector<128x256xf32> to vector<128x256xbf16>
    %c0_21 = arith.constant 0 : index
    %c0_22 = arith.constant 0 : index
    %c0_23 = arith.constant 0 : index
    %34 = vector.load %arg10[%c0_21, %c0_22, %c0_23] : memref<1x128x256xbf16, #tpu.memory_space<vmem>>, vector<1x128x256xbf16>
    %35 = vector.shape_cast %34 : vector<1x128x256xbf16> to vector<128x256xbf16>
    %36 = vector.shape_cast %33 : vector<128x256xbf16> to vector<1x128x256xbf16>
    tpu.vector_store %arg10[%c0_21, %c0_22, %c0_23], %36 {strides = array<i32>} : memref<1x128x256xbf16, #tpu.memory_space<vmem>>, vector<1x128x256xbf16>,
    return
  }
  func.func @transform_0(%arg0: i32, %arg1: i32) -> (i32, i32, i32) {
    %c0_i32 = arith.constant 0 : i32
    %c0_i32_0 = arith.constant 0 : i32
    return %arg0, %c0_i32, %arg1 : i32, i32, i32
  }
  func.func @transform_1(%arg0: i32, %arg1: i32) -> (i32, i32, i32) {
    %c0_i32 = arith.constant 0 : i32
    %c0_i32_0 = arith.constant 0 : i32
    return %arg0, %c0_i32, %arg1 : i32, i32, i32
  }
  func.func @transform_2(%arg0: i32, %arg1: i32) -> (i32, i32) {
    %c0_i32 = arith.constant 0 : i32
    %c0_i32_0 = arith.constant 0 : i32
    %c0_i32_1 = arith.constant 0 : i32
    return %c0_i32, %c0_i32_0 : i32, i32
  }
  func.func @transform_3(%arg0: i32, %arg1: i32) -> (i32, i32) {
    %c0_i32 = arith.constant 0 : i32
    %c0_i32_0 = arith.constant 0 : i32
    %c0_i32_1 = arith.constant 0 : i32
    return %c0_i32, %c0_i32_0 : i32, i32
  }
  func.func @transform_4(%arg0: i32, %arg1: i32) -> (i32, i32) {
    %c0_i32 = arith.constant 0 : i32
    %c0_i32_0 = arith.constant 0 : i32
    %c0_i32_1 = arith.constant 0 : i32
    return %c0_i32, %c0_i32_0 : i32, i32
  }
  func.func @transform_5(%arg0: i32, %arg1: i32) -> (i32, i32) {
    %c0_i32 = arith.constant 0 : i32
    %c0_i32_0 = arith.constant 0 : i32
    %c0_i32_1 = arith.constant 0 : i32
    return %c0_i32, %c0_i32_0 : i32, i32
  }
  func.func @transform_6(%arg0: i32, %arg1: i32) -> (i32, i32) {
    %c0_i32 = arith.constant 0 : i32
    %c0_i32_0 = arith.constant 0 : i32
    %c0_i32_1 = arith.constant 0 : i32
    return %c0_i32, %c0_i32_0 : i32, i32
  }
  func.func @transform_7(%arg0: i32, %arg1: i32) -> (i32, i32) {
    %c0_i32 = arith.constant 0 : i32
    %c0_i32_0 = arith.constant 0 : i32
    %c0_i32_1 = arith.constant 0 : i32
    return %c0_i32, %c0_i32_0 : i32, i32
  }
  func.func @transform_8(%arg0: i32, %arg1: i32) -> (i32, i32, i32) {
    %c0_i32 = arith.constant 0 : i32
    %c0_i32_0 = arith.constant 0 : i32
    return %arg0, %c0_i32, %arg1 : i32, i32, i32
  }
}

</mosaic_0001>

<llo_original>
// kernel: attention_block_jit.1
$region0: #{attention_block_jit.1}
  #allocation0 [shape = 'u32[]', space=smem, size = 0x4, offset = 0x4, fixed_abs, tag = 'smem constant byte address 0x4 - core index']
  #allocation1 [shape = 'u32[72,128]{1,0:T(1,128)}', space=vmem, size = 0x9000, scoped, tag = 'internal scratch']
  #allocation2 [shape = 'f32[1,1]{1,0:T(1,128)S(1)}', space=vmem, size = 0x200, scoped, tag = 'scoped memory for attention_block_jit.1']
  %s0 = inlined_call_operand.vmem [shape: bf16[2,128,256], index: 0, kind: input, shape index: {}]
  %s1 = inlined_call_operand.vmem [shape: bf16[2,128,256], index: 1, kind: input, shape index: {}]
  %s2 = inlined_call_operand.vmem [shape: bf16[64,128], index: 2, kind: input, shape index: {}]
  %s3 = inlined_call_operand.vmem [shape: bf16[64,128], index: 3, kind: input, shape index: {}]
  %s4 = inlined_call_operand.vmem [shape: f32[64,1], index: 4, kind: input, shape index: {}]
  %s5 = inlined_call_operand.vmem [shape: f32[64,1], index: 5, kind: input, shape index: {}]
  %s6 = inlined_call_operand.vmem [shape: f32[64,1], index: 6, kind: input, shape index: {}]
  %s7 = inlined_call_operand.<no memory space> [shape: f32[1,1], index: 7, kind: input, shape index: {}]
  %s8 = inlined_call_operand.vmem [shape: bf16[2,128,256], index: 8, kind: output, shape index: {}]
  %s9 = sld [smem:[#allocation0]]
  $region65: #{attention_block_jit.1} parent=0
    _
  %s11 = ssub.s32 1, %s9
  %s12 = scalar_select 0, %s11, %s9
  %v13 = vstv %s7
  %14 = vst [vmem:[#allocation2] sm:$0x1] %v13
  loop: start=0, step=1, limit=4
  $region2: #{attention_block_jit.1} parent=0 // loop_pre_header
    _
  $region3: #{attention_block_jit.1} parent=0 // loop_header
    %s16 = sphi 0, %s20
    %p17 = scmp.ge.s32.totalorder %s16, 4
    %s23 = sphi 0, %s35
    %s24 = sphi 0, %s31
    %s25 = sphi 0, %s23
    %s26 = sphi 0, %s24
    %s27 = sphi 0, %s25
    %s28 = sphi 0, %s26
    %s40 = sphi 0, %s42
    %s43 = sphi 0, %s40
    %s44 = sphi 0, %s43
    %s60 = sphi 0, %s44
    %s68 = sphi 0, %s70
    %s71 = sphi 0, %s68
    %s72 = sphi 0, %s71
    %s88 = sphi 0, %s72
    %s92 = sphi 0, %s92
    %s94 = sphi 0, %s92
    %s95 = sphi 0, %s94
    %s109 = sphi 0, %s95
    %s113 = sphi 0, %s113
    %s115 = sphi 0, %s113
    %s116 = sphi 0, %s115
    %s130 = sphi 0, %s116
    %s134 = sphi 0, %s134
    %s136 = sphi 0, %s134
    %s137 = sphi 0, %s136
    %s151 = sphi 0, %s137
    %s155 = sphi 0, %s155
    %s157 = sphi 0, %s155
    %s158 = sphi 0, %s157
    %s172 = sphi 0, %s158
    %s176 = sphi 0, %s176
    %s178 = sphi 0, %s176
    %s179 = sphi 0, %s178
    %s193 = sphi 0, %s179
    %s197 = sphi 0, %s197
    %s199 = sphi 0, %s197
    %s200 = sphi 0, %s199
    %s214 = sphi 0, %s200
    %s222 = sphi 0, %s224
    %s225 = sphi 0, %s222
    %s226 = sphi 0, %s225
    %s242 = sphi 0, %s226
  $region4: #{attention_block_jit.1} parent=0 // loop_header_branch
    %19 = sbr.rel (%p17) target = $region8
  $region5: #{attention_block_jit.1} parent=0 // loop_body
    %s21 = ssub.s32 %s16, 1
    %s22 = ssub.s32 %s16, 2
    %s29 = sadd.s32 1, %s24
    %p30 = scmp.ge.s32.totalorder %s29, 1
    %s31 = scalar_select %p30, 0, %s29
    %s32 = sadd.s32 1, %s23
    %s33 = scalar_select %p30, %s32, %s23
    %p34 = scmp.ge.s32.totalorder %s33, 2
    %s35 = scalar_select %p34, 0, %s33
    %s36 = ssub.s32 %s23, %s35
    %s37 = ssub.s32 %s24, %s31
    %s38 = sor.u32 %s36, %s37
    %p39 = scmp.eq.s32.totalorder %s38, 0
    %s41 = sadd.s32 %s40, 1
    %s42 = scalar_select %p39, %s40, %s41
    %p45 = pneg %p39
    %p46 = scmp.eq.s32.totalorder %s16, 1
    %p47 = por %p45, %p46
    %p48 = scmp.ne.s32.totalorder %s40, %s43
    %p49 = scmp.eq.s32.totalorder %s16, 0
    %p50 = por %p48, %p49
    %p51 = scmp.ne.s32.totalorder %s40, %s43
    %p52 = scmp.eq.s32.totalorder %s21, 1
    %p53 = por %p51, %p52
    %p54 = scmp.ne.s32.totalorder %s43, %s44
    %p55 = scmp.eq.s32.totalorder %s21, 0
    %p56 = por %p54, %p55
    %p57 = scmp.ne.s32.totalorder %s43, %s44
    %p58 = scmp.eq.s32.totalorder %s22, 1
    %p59 = por %p57, %p58
    %p61 = scmp.ne.s32.totalorder %s44, %s60
    %p62 = scmp.eq.s32.totalorder %s22, 0
    %p63 = por %p61, %p62
    %s64 = ssub.s32 %s23, %s35
    %s65 = ssub.s32 %s24, %s31
    %s66 = sor.u32 %s64, %s65
    %p67 = scmp.eq.s32.totalorder %s66, 0
    %s69 = sadd.s32 %s68, 1
    %s70 = scalar_select %p67, %s68, %s69
    %p73 = pneg %p67
    %p74 = scmp.eq.s32.totalorder %s16, 1
    %p75 = por %p73, %p74
    %p76 = scmp.ne.s32.totalorder %s68, %s71
    %p77 = scmp.eq.s32.totalorder %s16, 0
    %p78 = por %p76, %p77
    %p79 = scmp.ne.s32.totalorder %s68, %s71
    %p80 = scmp.eq.s32.totalorder %s21, 1
    %p81 = por %p79, %p80
    %p82 = scmp.ne.s32.totalorder %s71, %s72
    %p83 = scmp.eq.s32.totalorder %s21, 0
    %p84 = por %p82, %p83
    %p85 = scmp.ne.s32.totalorder %s71, %s72
    %p86 = scmp.eq.s32.totalorder %s22, 1
    %p87 = por %p85, %p86
    %p89 = scmp.ne.s32.totalorder %s72, %s88
    %p90 = scmp.eq.s32.totalorder %s22, 0
    %p91 = por %p89, %p90
    %s93 = sadd.s32 %s92, 1
    %p96 = scmp.eq.s32.totalorder %s16, 1
    %p97 = scmp.ne.s32.totalorder %s92, %s94
    %p98 = scmp.eq.s32.totalorder %s16, 0
    %p99 = por %p97, %p98
    %p100 = scmp.ne.s32.totalorder %s92, %s94
    %p101 = scmp.eq.s32.totalorder %s21, 1
    %p102 = por %p100, %p101
    %p103 = scmp.ne.s32.totalorder %s94, %s95
    %p104 = scmp.eq.s32.totalorder %s21, 0
    %p105 = por %p103, %p104
    %p106 = scmp.ne.s32.totalorder %s94, %s95
    %p107 = scmp.eq.s32.totalorder %s22, 1
    %p108 = por %p106, %p107
    %p110 = scmp.ne.s32.totalorder %s95, %s109
    %p111 = scmp.eq.s32.totalorder %s22, 0
    %p112 = por %p110, %p111
    %s114 = sadd.s32 %s113, 1
    %p117 = scmp.eq.s32.totalorder %s16, 1
    %p118 = scmp.ne.s32.totalorder %s113, %s115
    %p119 = scmp.eq.s32.totalorder %s16, 0
    %p120 = por %p118, %p119
    %p121 = scmp.ne.s32.totalorder %s113, %s115
    %p122 = scmp.eq.s32.totalorder %s21, 1
    %p123 = por %p121, %p122
    %p124 = scmp.ne.s32.totalorder %s115, %s116
    %p125 = scmp.eq.s32.totalorder %s21, 0
    %p126 = por %p124, %p125
    %p127 = scmp.ne.s32.totalorder %s115, %s116
    %p128 = scmp.eq.s32.totalorder %s22, 1
    %p129 = por %p127, %p128
    %p131 = scmp.ne.s32.totalorder %s116, %s130
    %p132 = scmp.eq.s32.totalorder %s22, 0
    %p133 = por %p131, %p132
    %s135 = sadd.s32 %s134, 1
    %p138 = scmp.eq.s32.totalorder %s16, 1
    %p139 = scmp.ne.s32.totalorder %s134, %s136
    %p140 = scmp.eq.s32.totalorder %s16, 0
    %p141 = por %p139, %p140
    %p142 = scmp.ne.s32.totalorder %s134, %s136
    %p143 = scmp.eq.s32.totalorder %s21, 1
    %p144 = por %p142, %p143
    %p145 = scmp.ne.s32.totalorder %s136, %s137
    %p146 = scmp.eq.s32.totalorder %s21, 0
    %p147 = por %p145, %p146
    %p148 = scmp.ne.s32.totalorder %s136, %s137
    %p149 = scmp.eq.s32.totalorder %s22, 1
    %p150 = por %p148, %p149
    %p152 = scmp.ne.s32.totalorder %s137, %s151
    %p153 = scmp.eq.s32.totalorder %s22, 0
    %p154 = por %p152, %p153
    %s156 = sadd.s32 %s155, 1
    %p159 = scmp.eq.s32.totalorder %s16, 1
    %p160 = scmp.ne.s32.totalorder %s155, %s157
    %p161 = scmp.eq.s32.totalorder %s16, 0
    %p162 = por %p160, %p161
    %p163 = scmp.ne.s32.totalorder %s155, %s157
    %p164 = scmp.eq.s32.totalorder %s21, 1
    %p165 = por %p163, %p164
    %p166 = scmp.ne.s32.totalorder %s157, %s158
    %p167 = scmp.eq.s32.totalorder %s21, 0
    %p168 = por %p166, %p167
    %p169 = scmp.ne.s32.totalorder %s157, %s158
    %p170 = scmp.eq.s32.totalorder %s22, 1
    %p171 = por %p169, %p170
    %p173 = scmp.ne.s32.totalorder %s158, %s172
    %p174 = scmp.eq.s32.totalorder %s22, 0
    %p175 = por %p173, %p174
    %s177 = sadd.s32 %s176, 1
    %p180 = scmp.eq.s32.totalorder %s16, 1
    %p181 = scmp.ne.s32.totalorder %s176, %s178
    %p182 = scmp.eq.s32.totalorder %s16, 0
    %p183 = por %p181, %p182
    %p184 = scmp.ne.s32.totalorder %s176, %s178
    %p185 = scmp.eq.s32.totalorder %s21, 1
    %p186 = por %p184, %p185
    %p187 = scmp.ne.s32.totalorder %s178, %s179
    %p188 = scmp.eq.s32.totalorder %s21, 0
    %p189 = por %p187, %p188
    %p190 = scmp.ne.s32.totalorder %s178, %s179
    %p191 = scmp.eq.s32.totalorder %s22, 1
    %p192 = por %p190, %p191
    %p194 = scmp.ne.s32.totalorder %s179, %s193
    %p195 = scmp.eq.s32.totalorder %s22, 0
    %p196 = por %p194, %p195
    %s198 = sadd.s32 %s197, 1
    %p201 = scmp.eq.s32.totalorder %s16, 1
    %p202 = scmp.ne.s32.totalorder %s197, %s199
    %p203 = scmp.eq.s32.totalorder %s16, 0
    %p204 = por %p202, %p203
    %p205 = scmp.ne.s32.totalorder %s197, %s199
    %p206 = scmp.eq.s32.totalorder %s21, 1
    %p207 = por %p205, %p206
    %p208 = scmp.ne.s32.totalorder %s199, %s200
    %p209 = scmp.eq.s32.totalorder %s21, 0
    %p210 = por %p208, %p209
    %p211 = scmp.ne.s32.totalorder %s199, %s200
    %p212 = scmp.eq.s32.totalorder %s22, 1
    %p213 = por %p211, %p212
    %p215 = scmp.ne.s32.totalorder %s200, %s214
    %p216 = scmp.eq.s32.totalorder %s22, 0
    %p217 = por %p215, %p216
    %s218 = ssub.s32 %s23, %s35
    %s219 = ssub.s32 %s24, %s31
    %s220 = sor.u32 %s218, %s219
    %p221 = scmp.eq.s32.totalorder %s220, 0
    %s223 = sadd.s32 %s222, 1
    %s224 = scalar_select %p221, %s222, %s223
    %p227 = pneg %p221
    %p228 = scmp.eq.s32.totalorder %s16, 1
    %p229 = por %p227, %p228
    %p230 = scmp.ne.s32.totalorder %s222, %s225
    %p231 = scmp.eq.s32.totalorder %s16, 0
    %p232 = por %p230, %p231
    %p233 = scmp.ne.s32.totalorder %s222, %s225
    %p234 = scmp.eq.s32.totalorder %s21, 1
    %p235 = por %p233, %p234
    %p236 = scmp.ne.s32.totalorder %s225, %s226
    %p237 = scmp.eq.s32.totalorder %s21, 0
    %p238 = por %p236, %p237
    %p239 = scmp.ne.s32.totalorder %s225, %s226
    %p240 = scmp.eq.s32.totalorder %s22, 1
    %p241 = por %p239, %p240
    %p243 = scmp.ne.s32.totalorder %s226, %s242
    %p244 = scmp.eq.s32.totalorder %s22, 0
    %p245 = por %p243, %p244
    %p246 = scmp.le.s32.totalorder 1, %s16
    %p247 = scmp.lt.s32.totalorder %s16, 3
    %p248 = pnand %p246, %p247
    %p249 = pneg %p248
    // Predicated region
    $region9: #{attention_block_jit.1} parent=5 // pred_check
      _
    $region10: #{attention_block_jit.1} parent=5 // pred_check_branch
      %251 = sbr.rel (%p248) target = $region12
    $region11: #{attention_block_jit.1} parent=5 // pred_region
      %s252 = ssub.s32 %s16, 1
      // Predicated region
      $region13: #{attention_block_jit.1} parent=11 // pred_check
        %p253 = pneg %p105
      $region14: #{attention_block_jit.1} parent=11 // pred_check_branch
        %255 = sbr.rel (%p253) target = $region16
      $region15: #{attention_block_jit.1} parent=11 // pred_region
        _
      $region16: #{attention_block_jit.1} parent=11 // pred_fallthru
        _
      // Predicated region
      $region17: #{attention_block_jit.1} parent=11 // pred_check
        %p256 = pneg %p126
      $region18: #{attention_block_jit.1} parent=11 // pred_check_branch
        %258 = sbr.rel (%p256) target = $region20
      $region19: #{attention_block_jit.1} parent=11 // pred_region
        _
      $region20: #{attention_block_jit.1} parent=11 // pred_fallthru
        _
      // Predicated region
      $region21: #{attention_block_jit.1} parent=11 // pred_check
        %p259 = pneg %p147
      $region22: #{attention_block_jit.1} parent=11 // pred_check_branch
        %261 = sbr.rel (%p259) target = $region24
      $region23: #{attention_block_jit.1} parent=11 // pred_region
        _
      $region24: #{attention_block_jit.1} parent=11 // pred_fallthru
        _
      // Predicated region
      $region25: #{attention_block_jit.1} parent=11 // pred_check
        %p262 = pneg %p168
      $region26: #{attention_block_jit.1} parent=11 // pred_check_branch
        %264 = sbr.rel (%p262) target = $region28
      $region27: #{attention_block_jit.1} parent=11 // pred_region
        _
      $region28: #{attention_block_jit.1} parent=11 // pred_fallthru
        _
      // Predicated region
      $region29: #{attention_block_jit.1} parent=11 // pred_check
        %p265 = pneg %p189
      $region30: #{attention_block_jit.1} parent=11 // pred_check_branch
        %267 = sbr.rel (%p265) target = $region32
      $region31: #{attention_block_jit.1} parent=11 // pred_region
        _
      $region32: #{attention_block_jit.1} parent=11 // pred_fallthru
        _
      // Predicated region
      $region33: #{attention_block_jit.1} parent=11 // pred_check
        %p268 = pneg %p210
      $region34: #{attention_block_jit.1} parent=11 // pred_check_branch
        %270 = sbr.rel (%p268) target = $region36
      $region35: #{attention_block_jit.1} parent=11 // pred_region
        _
      $region36: #{attention_block_jit.1} parent=11 // pred_fallthru
        _
    $region12: #{attention_block_jit.1} parent=5 // pred_fallthru
      _
    %p271 = scmp.lt.s32.totalorder %s16, 2
    // Predicated region
    $region37: #{attention_block_jit.1} parent=5 // pred_check
      %p272 = pneg %p271
    $region38: #{attention_block_jit.1} parent=5 // pred_check_branch
      %274 = sbr.rel (%p272) target = $region40
    $region39: #{attention_block_jit.1} parent=5 // pred_region
      // Predicated region
      $region41: #{attention_block_jit.1} parent=39 // pred_check
        %p275 = pneg %p50
      $region42: #{attention_block_jit.1} parent=39 // pred_check_branch
        %277 = sbr.rel (%p275) target = $region44
      $region43: #{attention_block_jit.1} parent=39 // pred_region
        %s278 = smul.u32 2, %s24
        %p279 = scmp.lt.s32.totalorder %s23, 1
        %s280 = scalar_select %p279, %s23, 1
        %p281 = scmp.lt.s32.totalorder %s278, 1
        %s282 = scalar_select %p281, %s278, 1
        %s283 = smul.addr %s280, 32
        %s284 = sadd.s32 %s282, %s283
        %s285 = smul.addr %s284, 4
        %s286 = scalar_lea.vmem %s0, %s285
        %s287 = smul.u32 2, %s24
      $region44: #{attention_block_jit.1} parent=39 // pred_fallthru
        _
      // Predicated region
      $region45: #{attention_block_jit.1} parent=39 // pred_check
        %p288 = pneg %p78
      $region46: #{attention_block_jit.1} parent=39 // pred_check_branch
        %290 = sbr.rel (%p288) target = $region48
      $region47: #{attention_block_jit.1} parent=39 // pred_region
        %s291 = smul.u32 2, %s24
        %p292 = scmp.lt.s32.totalorder %s23, 1
        %s293 = scalar_select %p292, %s23, 1
        %p294 = scmp.lt.s32.totalorder %s291, 1
        %s295 = scalar_select %p294, %s291, 1
        %s296 = smul.addr %s293, 32
        %s297 = sadd.s32 %s295, %s296
        %s298 = smul.addr %s297, 4
        %s299 = scalar_lea.vmem %s1, %s298
        %s300 = smul.u32 2, %s24
      $region48: #{attention_block_jit.1} parent=39 // pred_fallthru
        _
    $region40: #{attention_block_jit.1} parent=5 // pred_fallthru
      _
    %p301 = scmp.le.s32.totalorder 1, %s16
    %p302 = scmp.lt.s32.totalorder %s16, 3
    %p303 = pnand %p301, %p302
    %p304 = pneg %p303
    // Predicated region
    $region49: #{attention_block_jit.1} parent=5 // pred_check
      _
    $region50: #{attention_block_jit.1} parent=5 // pred_check_branch
      %306 = sbr.rel (%p303) target = $region52
    $region51: #{attention_block_jit.1} parent=5 // pred_region
      %s307 = ssub.s32 %s16, 1
      %s308 = smul.u32 2, %s26
      %p309 = scmp.lt.s32.totalorder %s25, 1
      %s310 = scalar_select %p309, %s25, 1
      %p311 = scmp.lt.s32.totalorder %s308, 1
      %s312 = scalar_select %p311, %s308, 1
      %s313 = smul.addr %s310, 32
      %s314 = sadd.s32 %s312, %s313
      %s315 = smul.addr %s314, 4
      %s316 = scalar_lea.vmem %s0, %s315
      %p317 = pneg %p56
      %p318 = pneg %p53
      %s319 = smul.u32 2, %s26
      %p320 = scmp.lt.s32.totalorder %s25, 1
      %s321 = scalar_select %p320, %s25, 1
      %p322 = scmp.lt.s32.totalorder %s319, 1
      %s323 = scalar_select %p322, %s319, 1
      %s324 = smul.addr %s321, 32
      %s325 = sadd.s32 %s323, %s324
      %s326 = smul.addr %s325, 4
      %s327 = scalar_lea.vmem %s1, %s326
      %p328 = pneg %p84
      %p329 = pneg %p81
      %p330 = pneg %p105
      %p331 = pneg %p102
      %p332 = pneg %p126
      %p333 = pneg %p123
      %p334 = pneg %p147
      %p335 = pneg %p144
      %p336 = pneg %p168
      %p337 = pneg %p165
      %p338 = pneg %p189
      %p339 = pneg %p186
      %p340 = pneg %p210
      %p341 = pneg %p207
      %p342 = pneg %p238
      %p343 = pneg %p235
      %s344 = smul.u32 2, %s26
      %p345 = scmp.lt.s32.totalorder %s25, 1
      %s346 = scalar_select %p345, %s25, 1
      %p347 = scmp.lt.s32.totalorder %s344, 1
      %s348 = scalar_select %p347, %s344, 1
      %s349 = smul.addr %s346, 32
      %s350 = sadd.s32 %s348, %s349
      %s351 = smul.addr %s350, 4
      %s352 = scalar_lea.vmem %s8, %s351
      %s353 = smul.u32 2, %s26
      %p354 = scmp.lt.s32.totalorder %s25, 1
      %s355 = scalar_select %p354, %s25, 1
      %p356 = scmp.lt.s32.totalorder %s353, 1
      %s357 = scalar_select %p356, %s353, 1
      %s358 = smul.addr %s355, 32
      %s359 = sadd.s32 %s357, %s358
      %s360 = smul.addr %s359, 4
      %s361 = scalar_lea.vmem %s0, %s360
      %s362 = smul.u32 2, %s26
      %s363 = smul.u32 2, %s26
      %p364 = scmp.lt.s32.totalorder %s25, 1
      %s365 = scalar_select %p364, %s25, 1
      %p366 = scmp.lt.s32.totalorder %s363, 1
      %s367 = scalar_select %p366, %s363, 1
      %s368 = smul.addr %s365, 32
      %s369 = sadd.s32 %s367, %s368
      %s370 = smul.addr %s369, 4
      %s371 = scalar_lea.vmem %s1, %s370
      %s372 = smul.u32 2, %s26
      %s373 = smul.u32 2, %s26
      %p374 = scmp.lt.s32.totalorder %s25, 1
      %s375 = scalar_select %p374, %s25, 1
      %p376 = scmp.lt.s32.totalorder %s373, 1
      %s377 = scalar_select %p376, %s373, 1
      %s378 = smul.addr %s375, 32
      %s379 = sadd.s32 %s377, %s378
      %s380 = smul.addr %s379, 4
      %s381 = scalar_lea.vmem %s8, %s380
      %s382 = smul.u32 2, %s26
      %v383 = vld [vmem:[%s361] sm:$0xff]
      %v384 = vld [vmem:[%s361 + $0x8] sm:$0xff]
      %v385 = vld [vmem:[%s361 + $0x10] sm:$0xff]
      %v386 = vld [vmem:[%s361 + $0x18] sm:$0xff]
      %v387 = vld [vmem:[%s361 + $0x20] sm:$0xff]
      %v388 = vld [vmem:[%s361 + $0x28] sm:$0xff]
      %v389 = vld [vmem:[%s361 + $0x30] sm:$0xff]
      %v390 = vld [vmem:[%s361 + $0x38] sm:$0xff]
      %v391 = vld [vmem:[%s361 + $0x40] sm:$0xff]
      %v392 = vld [vmem:[%s361 + $0x48] sm:$0xff]
      %v393 = vld [vmem:[%s361 + $0x50] sm:$0xff]
      %v394 = vld [vmem:[%s361 + $0x58] sm:$0xff]
      %v395 = vld [vmem:[%s361 + $0x60] sm:$0xff]
      %v396 = vld [vmem:[%s361 + $0x68] sm:$0xff]
      %v397 = vld [vmem:[%s361 + $0x70] sm:$0xff]
      %v398 = vld [vmem:[%s361 + $0x78] sm:$0xff]
      %v399 = vld [vmem:[%s371] sm:$0xff]
      %v400 = vld [vmem:[%s371 + $0x8] sm:$0xff]
      %v401 = vld [vmem:[%s371 + $0x10] sm:$0xff]
      %v402 = vld [vmem:[%s371 + $0x18] sm:$0xff]
      %v403 = vld [vmem:[%s371 + $0x20] sm:$0xff]
      %v404 = vld [vmem:[%s371 + $0x28] sm:$0xff]
      %v405 = vld [vmem:[%s371 + $0x30] sm:$0xff]
      %v406 = vld [vmem:[%s371 + $0x38] sm:$0xff]
      %v407 = vld [vmem:[%s371 + $0x40] sm:$0xff]
      %v408 = vld [vmem:[%s371 + $0x48] sm:$0xff]
      %v409 = vld [vmem:[%s371 + $0x50] sm:$0xff]
      %v410 = vld [vmem:[%s371 + $0x58] sm:$0xff]
      %v411 = vld [vmem:[%s371 + $0x60] sm:$0xff]
      %v412 = vld [vmem:[%s371 + $0x68] sm:$0xff]
      %v413 = vld [vmem:[%s371 + $0x70] sm:$0xff]
      %v414 = vld [vmem:[%s371 + $0x78] sm:$0xff]
      %v415 = vld [vmem:[%s2] sm:$0xf]
      %v416 = vld [vmem:[%s2 + $0x4] sm:$0xf]
      %v417 = vld [vmem:[%s2 + $0x8] sm:$0xf]
      %v418 = vld [vmem:[%s2 + $0xc] sm:$0xf]
      %v419 = vld [vmem:[%s2 + $0x10] sm:$0xf]
      %v420 = vld [vmem:[%s2 + $0x14] sm:$0xf]
      %v421 = vld [vmem:[%s2 + $0x18] sm:$0xf]
      %v422 = vld [vmem:[%s2 + $0x1c] sm:$0xf]
      %v423 = vld [vmem:[%s4] sm:$0xff]
      %v424 = vld [vmem:[%s4 + $0x8] sm:$0xff]
      %v425 = vld [vmem:[%s4 + $0x10] sm:$0xff]
      %v426 = vld [vmem:[%s4 + $0x18] sm:$0xff]
      %v427 = vld [vmem:[%s4 + $0x20] sm:$0xff]
      %v428 = vld [vmem:[%s4 + $0x28] sm:$0xff]
      %v429 = vld [vmem:[%s4 + $0x30] sm:$0xff]
      %v430 = vld [vmem:[%s4 + $0x38] sm:$0xff]
      %432 = vset.pattern.permute.xlu0 0
      %433 = vperm.xlu0 %432, %v423
      %v434 = vpop.permute.xlu0 %433
      %437 = vset.pattern.permute.xlu0 0
      %438 = vperm.xlu0 %437, %v424
      %v439 = vpop.permute.xlu0 %438
      %442 = vset.pattern.permute.xlu0 0
      %443 = vperm.xlu0 %442, %v425
      %v444 = vpop.permute.xlu0 %443
      %447 = vset.pattern.permute.xlu0 0
      %448 = vperm.xlu0 %447, %v426
      %v449 = vpop.permute.xlu0 %448
      %452 = vset.pattern.permute.xlu0 0
      %453 = vperm.xlu0 %452, %v427
      %v454 = vpop.permute.xlu0 %453
      %457 = vset.pattern.permute.xlu0 0
      %458 = vperm.xlu0 %457, %v428
      %v459 = vpop.permute.xlu0 %458
      %462 = vset.pattern.permute.xlu0 0
      %463 = vperm.xlu0 %462, %v429
      %v464 = vpop.permute.xlu0 %463
      %467 = vset.pattern.permute.xlu0 0
      %468 = vperm.xlu0 %467, %v430
      %v469 = vpop.permute.xlu0 %468
      %v479 = vunpack.c.l.b16 %v415
      %v480 = vunpack.c.l.b16 %v416
      %v481 = vunpack.c.l.b16 %v417
      %v482 = vunpack.c.l.b16 %v418
      %v483 = vunpack.c.l.b16 %v419
      %v484 = vunpack.c.l.b16 %v420
      %v485 = vunpack.c.l.b16 %v421
      %v486 = vunpack.c.l.b16 %v422
      %v487 = vpack.c.b16 %v480, %v479
      %v488 = vpack.c.b16 %v482, %v481
      %v489 = vpack.c.b16 %v484, %v483
      %v490 = vpack.c.b16 %v486, %v485
      %v511 = vunpack.c.l.b16 %v383
      %v512 = vunpack.c.h.b16 %v383
      %v513 = vunpack.c.l.b16 %v384
      %v514 = vunpack.c.h.b16 %v384
      %v515 = vunpack.c.l.b16 %v385
      %v516 = vunpack.c.h.b16 %v385
      %v517 = vunpack.c.l.b16 %v386
      %v518 = vunpack.c.h.b16 %v386
      %v519 = vunpack.c.l.b16 %v387
      %v520 = vunpack.c.h.b16 %v387
      %v521 = vunpack.c.l.b16 %v388
      %v522 = vunpack.c.h.b16 %v388
      %v523 = vunpack.c.l.b16 %v389
      %v524 = vunpack.c.h.b16 %v389
      %v525 = vunpack.c.l.b16 %v390
      %v526 = vunpack.c.h.b16 %v390
      %v527 = vunpack.c.l.b16 %v391
      %v528 = vunpack.c.h.b16 %v391
      %v529 = vunpack.c.l.b16 %v392
      %v530 = vunpack.c.h.b16 %v392
      %v531 = vunpack.c.l.b16 %v393
      %v532 = vunpack.c.h.b16 %v393
      %v533 = vunpack.c.l.b16 %v394
      %v534 = vunpack.c.h.b16 %v394
      %v535 = vunpack.c.l.b16 %v395
      %v536 = vunpack.c.h.b16 %v395
      %v537 = vunpack.c.l.b16 %v396
      %v538 = vunpack.c.h.b16 %v396
      %v539 = vunpack.c.l.b16 %v397
      %v540 = vunpack.c.h.b16 %v397
      %v541 = vunpack.c.l.b16 %v398
      %v542 = vunpack.c.h.b16 %v398
      %v543 = vpack.c.b16 %v513, %v511
      %v544 = vpack.c.b16 %v514, %v512
      %v545 = vpack.c.b16 %v517, %v515
      %v546 = vpack.c.b16 %v518, %v516
      %v547 = vpack.c.b16 %v521, %v519
      %v548 = vpack.c.b16 %v522, %v520
      %v549 = vpack.c.b16 %v525, %v523
      %v550 = vpack.c.b16 %v526, %v524
      %v551 = vpack.c.b16 %v529, %v527
      %v552 = vpack.c.b16 %v530, %v528
      %v553 = vpack.c.b16 %v533, %v531
      %v554 = vpack.c.b16 %v534, %v532
      %v555 = vpack.c.b16 %v537, %v535
      %v556 = vpack.c.b16 %v538, %v536
      %v557 = vpack.c.b16 %v541, %v539
      %v558 = vpack.c.b16 %v542, %v540
      %575 = vmatpush.bf16.msra.mxu0 %v557
      %576 = vmatpush.bf16.msra.mxu0 %v555
      %577 = vmatpush.bf16.msra.mxu0 %v553
      %578 = vmatpush.bf16.msra.mxu0 %v551
      %579 = vmatpush.bf16.msra.mxu0 %v549
      %580 = vmatpush.bf16.msra.mxu0 %v547
      %581 = vmatpush.bf16.msra.mxu0 %v545
      %582 = vmatpush.bf16.msra.mxu0 %v543
      %583 = vmatmul.bf16.gmra.mxu0 %v487
      %v584 = vpop.f32.mrf.mxu0
      %v585 = vadd.f32 %v434, %v584
      %v586 = vpop.f32.mrf.mxu0
      %v587 = vadd.f32 %v439, %v586
      %588 = vmatmul.bf16.gmra.mxu0 %v488
      %v589 = vpop.f32.mrf.mxu0
      %v590 = vadd.f32 %v444, %v589
      %v591 = vpop.f32.mrf.mxu0
      %v592 = vadd.f32 %v449, %v591
      %593 = vmatmul.bf16.gmra.mxu0 %v489
      %v594 = vpop.f32.mrf.mxu0
      %v595 = vadd.f32 %v454, %v594
      %v596 = vpop.f32.mrf.mxu0
      %v597 = vadd.f32 %v459, %v596
      %598 = vmatmul.bf16.gmra.mxu0 %v490
      %v599 = vpop.f32.mrf.mxu0
      %v600 = vadd.f32 %v464, %v599
      %v601 = vpop.f32.mrf.mxu0
      %v602 = vadd.f32 %v469, %v601
      %603 = vdwg.mxu0
      %604 = vmatpush.bf16.msra.mxu0 %v558
      %605 = vmatpush.bf16.msra.mxu0 %v556
      %606 = vmatpush.bf16.msra.mxu0 %v554
      %607 = vmatpush.bf16.msra.mxu0 %v552
      %608 = vmatpush.bf16.msra.mxu0 %v550
      %609 = vmatpush.bf16.msra.mxu0 %v548
      %610 = vmatpush.bf16.msra.mxu0 %v546
      %611 = vmatpush.bf16.msra.mxu0 %v544
      %612 = vmatmul.bf16.gmra.mxu0 %v487
      %v613 = vpop.f32.mrf.mxu0
      %v614 = vadd.f32 %v434, %v613
      %v615 = vpop.f32.mrf.mxu0
      %v616 = vadd.f32 %v439, %v615
      %617 = vmatmul.bf16.gmra.mxu0 %v488
      %v618 = vpop.f32.mrf.mxu0
      %v619 = vadd.f32 %v444, %v618
      %v620 = vpop.f32.mrf.mxu0
      %v621 = vadd.f32 %v449, %v620
      %622 = vmatmul.bf16.gmra.mxu0 %v489
      %v623 = vpop.f32.mrf.mxu0
      %v624 = vadd.f32 %v454, %v623
      %v625 = vpop.f32.mrf.mxu0
      %v626 = vadd.f32 %v459, %v625
      %627 = vmatmul.bf16.gmra.mxu0 %v490
      %v628 = vpop.f32.mrf.mxu0
      %v629 = vadd.f32 %v464, %v628
      %v630 = vpop.f32.mrf.mxu0
      %v631 = vadd.f32 %v469, %v630
      %632 = vdwg.mxu0
      %v633 = vld [vmem:[%s3] sm:$0xf]
      %v634 = vld [vmem:[%s3 + $0x4] sm:$0xf]
      %v635 = vld [vmem:[%s3 + $0x8] sm:$0xf]
      %v636 = vld [vmem:[%s3 + $0xc] sm:$0xf]
      %v637 = vld [vmem:[%s3 + $0x10] sm:$0xf]
      %v638 = vld [vmem:[%s3 + $0x14] sm:$0xf]
      %v639 = vld [vmem:[%s3 + $0x18] sm:$0xf]
      %v640 = vld [vmem:[%s3 + $0x1c] sm:$0xf]
      %v641 = vld [vmem:[%s5] sm:$0xff]
      %v642 = vld [vmem:[%s5 + $0x8] sm:$0xff]
      %v643 = vld [vmem:[%s5 + $0x10] sm:$0xff]
      %v644 = vld [vmem:[%s5 + $0x18] sm:$0xff]
      %v645 = vld [vmem:[%s5 + $0x20] sm:$0xff]
      %v646 = vld [vmem:[%s5 + $0x28] sm:$0xff]
      %v647 = vld [vmem:[%s5 + $0x30] sm:$0xff]
      %v648 = vld [vmem:[%s5 + $0x38] sm:$0xff]
      %650 = vset.pattern.permute.xlu0 0
      %651 = vperm.xlu0 %650, %v641
      %v652 = vpop.permute.xlu0 %651
      %655 = vset.pattern.permute.xlu0 0
      %656 = vperm.xlu0 %655, %v642
      %v657 = vpop.permute.xlu0 %656
      %660 = vset.pattern.permute.xlu0 0
      %661 = vperm.xlu0 %660, %v643
      %v662 = vpop.permute.xlu0 %661
      %665 = vset.pattern.permute.xlu0 0
      %666 = vperm.xlu0 %665, %v644
      %v667 = vpop.permute.xlu0 %666
      %670 = vset.pattern.permute.xlu0 0
      %671 = vperm.xlu0 %670, %v645
      %v672 = vpop.permute.xlu0 %671
      %675 = vset.pattern.permute.xlu0 0
      %676 = vperm.xlu0 %675, %v646
      %v677 = vpop.permute.xlu0 %676
      %680 = vset.pattern.permute.xlu0 0
      %681 = vperm.xlu0 %680, %v647
      %v682 = vpop.permute.xlu0 %681
      %685 = vset.pattern.permute.xlu0 0
      %686 = vperm.xlu0 %685, %v648
      %v687 = vpop.permute.xlu0 %686
      %v697 = vunpack.c.l.b16 %v633
      %v698 = vunpack.c.l.b16 %v634
      %v699 = vunpack.c.l.b16 %v635
      %v700 = vunpack.c.l.b16 %v636
      %v701 = vunpack.c.l.b16 %v637
      %v702 = vunpack.c.l.b16 %v638
      %v703 = vunpack.c.l.b16 %v639
      %v704 = vunpack.c.l.b16 %v640
      %v705 = vpack.c.b16 %v698, %v697
      %v706 = vpack.c.b16 %v700, %v699
      %v707 = vpack.c.b16 %v702, %v701
      %v708 = vpack.c.b16 %v704, %v703
      %v729 = vunpack.c.l.b16 %v399
      %v730 = vunpack.c.h.b16 %v399
      %v731 = vunpack.c.l.b16 %v400
      %v732 = vunpack.c.h.b16 %v400
      %v733 = vunpack.c.l.b16 %v401
      %v734 = vunpack.c.h.b16 %v401
      %v735 = vunpack.c.l.b16 %v402
      %v736 = vunpack.c.h.b16 %v402
      %v737 = vunpack.c.l.b16 %v403
      %v738 = vunpack.c.h.b16 %v403
      %v739 = vunpack.c.l.b16 %v404
      %v740 = vunpack.c.h.b16 %v404
      %v741 = vunpack.c.l.b16 %v405
      %v742 = vunpack.c.h.b16 %v405
      %v743 = vunpack.c.l.b16 %v406
      %v744 = vunpack.c.h.b16 %v406
      %v745 = vunpack.c.l.b16 %v407
      %v746 = vunpack.c.h.b16 %v407
      %v747 = vunpack.c.l.b16 %v408
      %v748 = vunpack.c.h.b16 %v408
      %v749 = vunpack.c.l.b16 %v409
      %v750 = vunpack.c.h.b16 %v409
      %v751 = vunpack.c.l.b16 %v410
      %v752 = vunpack.c.h.b16 %v410
      %v753 = vunpack.c.l.b16 %v411
      %v754 = vunpack.c.h.b16 %v411
      %v755 = vunpack.c.l.b16 %v412
      %v756 = vunpack.c.h.b16 %v412
      %v757 = vunpack.c.l.b16 %v413
      %v758 = vunpack.c.h.b16 %v413
      %v759 = vunpack.c.l.b16 %v414
      %v760 = vunpack.c.h.b16 %v414
      %v761 = vpack.c.b16 %v731, %v729
      %v762 = vpack.c.b16 %v732, %v730
      %v763 = vpack.c.b16 %v735, %v733
      %v764 = vpack.c.b16 %v736, %v734
      %v765 = vpack.c.b16 %v739, %v737
      %v766 = vpack.c.b16 %v740, %v738
      %v767 = vpack.c.b16 %v743, %v741
      %v768 = vpack.c.b16 %v744, %v742
      %v769 = vpack.c.b16 %v747, %v745
      %v770 = vpack.c.b16 %v748, %v746
      %v771 = vpack.c.b16 %v751, %v749
      %v772 = vpack.c.b16 %v752, %v750
      %v773 = vpack.c.b16 %v755, %v753
      %v774 = vpack.c.b16 %v756, %v754
      %v775 = vpack.c.b16 %v759, %v757
      %v776 = vpack.c.b16 %v760, %v758
      %793 = vmatpush.bf16.msra.mxu0 %v775
      %794 = vmatpush.bf16.msra.mxu0 %v773
      %795 = vmatpush.bf16.msra.mxu0 %v771
      %796 = vmatpush.bf16.msra.mxu0 %v769
      %797 = vmatpush.bf16.msra.mxu0 %v767
      %798 = vmatpush.bf16.msra.mxu0 %v765
      %799 = vmatpush.bf16.msra.mxu0 %v763
      %800 = vmatpush.bf16.msra.mxu0 %v761
      %801 = vmatmul.bf16.gmra.mxu0 %v705
      %v802 = vpop.f32.mrf.mxu0
      %v803 = vadd.f32 %v652, %v802
      %v804 = vpop.f32.mrf.mxu0
      %v805 = vadd.f32 %v657, %v804
      %806 = vmatmul.bf16.gmra.mxu0 %v706
      %v807 = vpop.f32.mrf.mxu0
      %v808 = vadd.f32 %v662, %v807
      %v809 = vpop.f32.mrf.mxu0
      %v810 = vadd.f32 %v667, %v809
      %811 = vmatmul.bf16.gmra.mxu0 %v707
      %v812 = vpop.f32.mrf.mxu0
      %v813 = vadd.f32 %v672, %v812
      %v814 = vpop.f32.mrf.mxu0
      %v815 = vadd.f32 %v677, %v814
      %816 = vmatmul.bf16.gmra.mxu0 %v708
      %v817 = vpop.f32.mrf.mxu0
      %v818 = vadd.f32 %v682, %v817
      %v819 = vpop.f32.mrf.mxu0
      %v820 = vadd.f32 %v687, %v819
      %821 = vdwg.mxu0
      %822 = vmatpush.bf16.msra.mxu0 %v776
      %823 = vmatpush.bf16.msra.mxu0 %v774
      %824 = vmatpush.bf16.msra.mxu0 %v772
      %825 = vmatpush.bf16.msra.mxu0 %v770
      %826 = vmatpush.bf16.msra.mxu0 %v768
      %827 = vmatpush.bf16.msra.mxu0 %v766
      %828 = vmatpush.bf16.msra.mxu0 %v764
      %829 = vmatpush.bf16.msra.mxu0 %v762
      %830 = vmatmul.bf16.gmra.mxu0 %v705
      %v831 = vpop.f32.mrf.mxu0
      %v832 = vadd.f32 %v652, %v831
      %v833 = vpop.f32.mrf.mxu0
      %v834 = vadd.f32 %v657, %v833
      %835 = vmatmul.bf16.gmra.mxu0 %v706
      %v836 = vpop.f32.mrf.mxu0
      %v837 = vadd.f32 %v662, %v836
      %v838 = vpop.f32.mrf.mxu0
      %v839 = vadd.f32 %v667, %v838
      %840 = vmatmul.bf16.gmra.mxu0 %v707
      %v841 = vpop.f32.mrf.mxu0
      %v842 = vadd.f32 %v672, %v841
      %v843 = vpop.f32.mrf.mxu0
      %v844 = vadd.f32 %v677, %v843
      %845 = vmatmul.bf16.gmra.mxu0 %v708
      %v846 = vpop.f32.mrf.mxu0
      %v847 = vadd.f32 %v682, %v846
      %v848 = vpop.f32.mrf.mxu0
      %v849 = vadd.f32 %v687, %v848
      %850 = vdwg.mxu0
      %v851 = vadd.f32 %v585, %v803
      %v852 = vadd.f32 %v614, %v832
      %v853 = vadd.f32 %v587, %v805
      %v854 = vadd.f32 %v616, %v834
      %v855 = vadd.f32 %v590, %v808
      %v856 = vadd.f32 %v619, %v837
      %v857 = vadd.f32 %v592, %v810
      %v858 = vadd.f32 %v621, %v839
      %v859 = vadd.f32 %v595, %v813
      %v860 = vadd.f32 %v624, %v842
      %v861 = vadd.f32 %v597, %v815
      %v862 = vadd.f32 %v626, %v844
      %v863 = vadd.f32 %v600, %v818
      %v864 = vadd.f32 %v629, %v847
      %v865 = vadd.f32 %v602, %v820
      %v866 = vadd.f32 %v631, %v849
      %v867 = vmax.f32 %v851, 0.0
      %v868 = vmax.f32 %v852, 0.0
      %v869 = vmax.f32 %v853, 0.0
      %v870 = vmax.f32 %v854, 0.0
      %v871 = vmax.f32 %v855, 0.0
      %v872 = vmax.f32 %v856, 0.0
      %v873 = vmax.f32 %v857, 0.0
      %v874 = vmax.f32 %v858, 0.0
      %v875 = vmax.f32 %v859, 0.0
      %v876 = vmax.f32 %v860, 0.0
      %v877 = vmax.f32 %v861, 0.0
      %v878 = vmax.f32 %v862, 0.0
      %v879 = vmax.f32 %v863, 0.0
      %v880 = vmax.f32 %v864, 0.0
      %v881 = vmax.f32 %v865, 0.0
      %v882 = vmax.f32 %v866, 0.0
      %v883 = vld [vmem:[%s6] sm:$0xff]
      %v884 = vld [vmem:[%s6 + $0x8] sm:$0xff]
      %v885 = vld [vmem:[%s6 + $0x10] sm:$0xff]
      %v886 = vld [vmem:[%s6 + $0x18] sm:$0xff]
      %v887 = vld [vmem:[%s6 + $0x20] sm:$0xff]
      %v888 = vld [vmem:[%s6 + $0x28] sm:$0xff]
      %v889 = vld [vmem:[%s6 + $0x30] sm:$0xff]
      %v890 = vld [vmem:[%s6 + $0x38] sm:$0xff]
      %892 = vset.pattern.permute.xlu0 0
      %893 = vperm.xlu0 %892, %v883
      %v894 = vpop.permute.xlu0 %893
      %897 = vset.pattern.permute.xlu0 0
      %898 = vperm.xlu0 %897, %v884
      %v899 = vpop.permute.xlu0 %898
      %902 = vset.pattern.permute.xlu0 0
      %903 = vperm.xlu0 %902, %v885
      %v904 = vpop.permute.xlu0 %903
      %907 = vset.pattern.permute.xlu0 0
      %908 = vperm.xlu0 %907, %v886
      %v909 = vpop.permute.xlu0 %908
      %912 = vset.pattern.permute.xlu0 0
      %913 = vperm.xlu0 %912, %v887
      %v914 = vpop.permute.xlu0 %913
      %917 = vset.pattern.permute.xlu0 0
      %918 = vperm.xlu0 %917, %v888
      %v919 = vpop.permute.xlu0 %918
      %922 = vset.pattern.permute.xlu0 0
      %923 = vperm.xlu0 %922, %v889
      %v924 = vpop.permute.xlu0 %923
      %927 = vset.pattern.permute.xlu0 0
      %928 = vperm.xlu0 %927, %v890
      %v929 = vpop.permute.xlu0 %928
      %v931 = vmul.f32 %v867, %v894
      %v932 = vmul.f32 %v868, %v894
      %v933 = vmul.f32 %v869, %v899
      %v934 = vmul.f32 %v870, %v899
      %v935 = vmul.f32 %v871, %v904
      %v936 = vmul.f32 %v872, %v904
      %v937 = vmul.f32 %v873, %v909
      %v938 = vmul.f32 %v874, %v909
      %v939 = vmul.f32 %v875, %v914
      %v940 = vmul.f32 %v876, %v914
      %v941 = vmul.f32 %v877, %v919
      %v942 = vmul.f32 %v878, %v919
      %v943 = vmul.f32 %v879, %v924
      %v944 = vmul.f32 %v880, %v924
      %v945 = vmul.f32 %v881, %v929
      %v946 = vmul.f32 %v882, %v929
      %v947 = vadd.f32 %v931, %v933
      %v948 = vadd.f32 %v947, %v935
      %v949 = vadd.f32 %v948, %v937
      %v950 = vadd.f32 %v949, %v939
      %v951 = vadd.f32 %v950, %v941
      %v952 = vadd.f32 %v951, %v943
      %v953 = vadd.f32 %v952, %v945
      %v954 = vrot.slane %v953, 4
      %v955 = vadd.f32 %v953, %v954
      %v956 = vrot.slane %v955, 2
      %v957 = vadd.f32 %v955, %v956
      %v958 = vrot.slane %v957, 1
      %v959 = vadd.f32 %v957, %v958
      %v960 = vadd.f32 %v932, %v934
      %v961 = vadd.f32 %v960, %v936
      %v962 = vadd.f32 %v961, %v938
      %v963 = vadd.f32 %v962, %v940
      %v964 = vadd.f32 %v963, %v942
      %v965 = vadd.f32 %v964, %v944
      %v966 = vadd.f32 %v965, %v946
      %v967 = vrot.slane %v966, 4
      %v968 = vadd.f32 %v966, %v967
      %v969 = vrot.slane %v968, 2
      %v970 = vadd.f32 %v968, %v969
      %v971 = vrot.slane %v970, 1
      %v972 = vadd.f32 %v970, %v971
      %v973 = vld [vmem:[#allocation2] sm:$0x1]
      %975 = vset.pattern.permute.xlu0 0
      %976 = vperm.xlu0 %975, %v973
      %v977 = vpop.permute.xlu0 %976
      %v979 = vperm.slane %v977, 0
      %v980 = vadd.f32 %v959, %v979
      %v981 = vadd.f32 %v972, %v979
      %v982 = vxor.u32 %v980, 2147483648
      %v983 = vxor.u32 %v981, 2147483648
      %v984 = vmul.f32 %v982, 1.442695
      %v985 = vpow.pop %v984
      %v986 = vmul.f32 %v983, 1.442695
      %v987 = vpow.pop %v986
      %v988 = vadd.f32 %v985, 1.0
      %v989 = vadd.f32 %v987, 1.0
      %v990 = vrcp.pop %v988
      %v991 = vmul.f32 %v988, %v990
      %v992 = vsub.f32 1.0, %v991
      %v993 = vmul.f32 %v990, %v992
      %v994 = vadd.f32 %v990, %v993
      %vm995 = vweird.f32 %v988
      %vm996 = vweird.f32 %v990
      %vm997 = vmor %vm995, %vm996
      %v998 = vsel %vm997, %v990, %v994
      %v999 = vand.u32 2147483647, %v988
      %vm1000 = vcmp.eq.f32.partialorder %v999, 8.507059e+37
      %v1001 = vand.u32 %v988, 2147483648
      %v1002 = vor.u32 1.1754944e-38, %v1001
      %v1003 = vsel %vm1000, %v1002, %v998
      %v1004 = vmul.f32 1.0, %v1003
      %v1005 = vrcp.pop %v989
      %v1006 = vmul.f32 %v989, %v1005
      %v1007 = vsub.f32 1.0, %v1006
      %v1008 = vmul.f32 %v1005, %v1007
      %v1009 = vadd.f32 %v1005, %v1008
      %vm1010 = vweird.f32 %v989
      %vm1011 = vweird.f32 %v1005
      %vm1012 = vmor %vm1010, %vm1011
      %v1013 = vsel %vm1012, %v1005, %v1009
      %v1014 = vand.u32 2147483647, %v989
      %vm1015 = vcmp.eq.f32.partialorder %v1014, 8.507059e+37
      %v1016 = vand.u32 %v989, 2147483648
      %v1017 = vor.u32 1.1754944e-38, %v1016
      %v1018 = vsel %vm1015, %v1017, %v1013
      %v1019 = vmul.f32 1.0, %v1018
      %v1020 = vunpack.c.l.bf16 %v399
      %v1021 = vunpack.c.h.bf16 %v399
      %v1022 = vunpack.c.l.bf16 %v400
      %v1023 = vunpack.c.h.bf16 %v400
      %v1024 = vunpack.c.l.bf16 %v401
      %v1025 = vunpack.c.h.bf16 %v401
      %v1026 = vunpack.c.l.bf16 %v402
      %v1027 = vunpack.c.h.bf16 %v402
      %v1028 = vunpack.c.l.bf16 %v403
      %v1029 = vunpack.c.h.bf16 %v403
      %v1030 = vunpack.c.l.bf16 %v404
      %v1031 = vunpack.c.h.bf16 %v404
      %v1032 = vunpack.c.l.bf16 %v405
      %v1033 = vunpack.c.h.bf16 %v405
      %v1034 = vunpack.c.l.bf16 %v406
      %v1035 = vunpack.c.h.bf16 %v406
      %v1036 = vunpack.c.l.bf16 %v407
      %v1037 = vunpack.c.h.bf16 %v407
      %v1038 = vunpack.c.l.bf16 %v408
      %v1039 = vunpack.c.h.bf16 %v408
      %v1040 = vunpack.c.l.bf16 %v409
      %v1041 = vunpack.c.h.bf16 %v409
      %v1042 = vunpack.c.l.bf16 %v410
      %v1043 = vunpack.c.h.bf16 %v410
      %v1044 = vunpack.c.l.bf16 %v411
      %v1045 = vunpack.c.h.bf16 %v411
      %v1046 = vunpack.c.l.bf16 %v412
      %v1047 = vunpack.c.h.bf16 %v412
      %v1048 = vunpack.c.l.bf16 %v413
      %v1049 = vunpack.c.h.bf16 %v413
      %v1050 = vunpack.c.l.bf16 %v414
      %v1051 = vunpack.c.h.bf16 %v414
      %v1052 = vmul.f32 %v1020, %v1004
      %v1053 = vmul.f32 %v1021, %v1019
      %v1054 = vmul.f32 %v1022, %v1004
      %v1055 = vmul.f32 %v1023, %v1019
      %v1056 = vmul.f32 %v1024, %v1004
      %v1057 = vmul.f32 %v1025, %v1019
      %v1058 = vmul.f32 %v1026, %v1004
      %v1059 = vmul.f32 %v1027, %v1019
      %v1060 = vmul.f32 %v1028, %v1004
      %v1061 = vmul.f32 %v1029, %v1019
      %v1062 = vmul.f32 %v1030, %v1004
      %v1063 = vmul.f32 %v1031, %v1019
      %v1064 = vmul.f32 %v1032, %v1004
      %v1065 = vmul.f32 %v1033, %v1019
      %v1066 = vmul.f32 %v1034, %v1004
      %v1067 = vmul.f32 %v1035, %v1019
      %v1068 = vmul.f32 %v1036, %v1004
      %v1069 = vmul.f32 %v1037, %v1019
      %v1070 = vmul.f32 %v1038, %v1004
      %v1071 = vmul.f32 %v1039, %v1019
      %v1072 = vmul.f32 %v1040, %v1004
      %v1073 = vmul.f32 %v1041, %v1019
      %v1074 = vmul.f32 %v1042, %v1004
      %v1075 = vmul.f32 %v1043, %v1019
      %v1076 = vmul.f32 %v1044, %v1004
      %v1077 = vmul.f32 %v1045, %v1019
      %v1078 = vmul.f32 %v1046, %v1004
      %v1079 = vmul.f32 %v1047, %v1019
      %v1080 = vmul.f32 %v1048, %v1004
      %v1081 = vmul.f32 %v1049, %v1019
      %v1082 = vmul.f32 %v1050, %v1004
      %v1083 = vmul.f32 %v1051, %v1019
      %v1084 = vpack.c.bf16 %v1053, %v1052
      %v1085 = vpack.c.bf16 %v1055, %v1054
      %v1086 = vpack.c.bf16 %v1057, %v1056
      %v1087 = vpack.c.bf16 %v1059, %v1058
      %v1088 = vpack.c.bf16 %v1061, %v1060
      %v1089 = vpack.c.bf16 %v1063, %v1062
      %v1090 = vpack.c.bf16 %v1065, %v1064
      %v1091 = vpack.c.bf16 %v1067, %v1066
      %v1092 = vpack.c.bf16 %v1069, %v1068
      %v1093 = vpack.c.bf16 %v1071, %v1070
      %v1094 = vpack.c.bf16 %v1073, %v1072
      %v1095 = vpack.c.bf16 %v1075, %v1074
      %v1096 = vpack.c.bf16 %v1077, %v1076
      %v1097 = vpack.c.bf16 %v1079, %v1078
      %v1098 = vpack.c.bf16 %v1081, %v1080
      %v1099 = vpack.c.bf16 %v1083, %v1082
      %1100 = vst [vmem:[%s381] sm:$0xff] %v1084
      %1101 = vst [vmem:[%s381 + $0x8] sm:$0xff] %v1085
      %1102 = vst [vmem:[%s381 + $0x10] sm:$0xff] %v1086
      %1103 = vst [vmem:[%s381 + $0x18] sm:$0xff] %v1087
      %1104 = vst [vmem:[%s381 + $0x20] sm:$0xff] %v1088
      %1105 = vst [vmem:[%s381 + $0x28] sm:$0xff] %v1089
      %1106 = vst [vmem:[%s381 + $0x30] sm:$0xff] %v1090
      %1107 = vst [vmem:[%s381 + $0x38] sm:$0xff] %v1091
      %1108 = vst [vmem:[%s381 + $0x40] sm:$0xff] %v1092
      %1109 = vst [vmem:[%s381 + $0x48] sm:$0xff] %v1093
      %1110 = vst [vmem:[%s381 + $0x50] sm:$0xff] %v1094
      %1111 = vst [vmem:[%s381 + $0x58] sm:$0xff] %v1095
      %1112 = vst [vmem:[%s381 + $0x60] sm:$0xff] %v1096
      %1113 = vst [vmem:[%s381 + $0x68] sm:$0xff] %v1097
      %1114 = vst [vmem:[%s381 + $0x70] sm:$0xff] %v1098
      %1115 = vst [vmem:[%s381 + $0x78] sm:$0xff] %v1099
      %s1116 = smul.u32 2, %s26
      %p1117 = scmp.lt.s32.totalorder %s25, 1
      %s1118 = scalar_select %p1117, %s25, 1
      %p1119 = scmp.lt.s32.totalorder %s1116, 1
      %s1120 = scalar_select %p1119, %s1116, 1
      %s1121 = smul.addr %s1118, 32
      %s1122 = sadd.s32 %s1120, %s1121
      %s1123 = smul.addr %s1122, 4
      %s1124 = scalar_lea.vmem %s8, %s1123
      // Predicated region
      $region53: #{attention_block_jit.1} parent=51 // pred_check
        %p1125 = pneg %p235
      $region54: #{attention_block_jit.1} parent=51 // pred_check_branch
        %1127 = sbr.rel (%p1125) target = $region56
      $region55: #{attention_block_jit.1} parent=51 // pred_region
        %s1128 = smul.u32 2, %s26
      $region56: #{attention_block_jit.1} parent=51 // pred_fallthru
        _
    $region52: #{attention_block_jit.1} parent=5 // pred_fallthru
      _
    %p1129 = scmp.le.s32.totalorder 2, %s16
    // Predicated region
    $region57: #{attention_block_jit.1} parent=5 // pred_check
      %p1130 = pneg %p1129
    $region58: #{attention_block_jit.1} parent=5 // pred_check_branch
      %1132 = sbr.rel (%p1130) target = $region60
    $region59: #{attention_block_jit.1} parent=5 // pred_region
      %s1133 = ssub.s32 %s16, 2
      // Predicated region
      $region61: #{attention_block_jit.1} parent=59 // pred_check
        %p1134 = pneg %p241
      $region62: #{attention_block_jit.1} parent=59 // pred_check_branch
        %1136 = sbr.rel (%p1134) target = $region64
      $region63: #{attention_block_jit.1} parent=59 // pred_region
        %s1137 = smul.u32 2, %s28
        %p1138 = scmp.lt.s32.totalorder %s27, 1
        %s1139 = scalar_select %p1138, %s27, 1
        %p1140 = scmp.lt.s32.totalorder %s1137, 1
        %s1141 = scalar_select %p1140, %s1137, 1
        %s1142 = smul.addr %s1139, 32
        %s1143 = sadd.s32 %s1141, %s1142
        %s1144 = smul.addr %s1143, 4
        %s1145 = scalar_lea.vmem %s8, %s1144
      $region64: #{attention_block_jit.1} parent=59 // pred_fallthru
        _
    $region60: #{attention_block_jit.1} parent=5 // pred_fallthru
      _
  $region6: #{attention_block_jit.1} parent=0 // loop_footer
    %s20 = sadd.s32 1, %s16
  $region7: #{attention_block_jit.1} parent=0 // loop_footer_branch
    %15 = sbr.rel target = $region3
  $region8: #{attention_block_jit.1} parent=0 // loop_exit
    _

</llo_original>
